<compile_context>
chip_gen: v5e
topology: v5e:2x2
jax: 0.10.0
libtpu: 0.0.40
codegen_flags: <defaults>
</compile_context>

<pallas_src>
import jax
import jax.numpy as jnp
from jax.experimental import pallas as pl
from jax.experimental.pallas import tpu as pltpu


def _round_up(v, m):
    return (v + m - 1) // m * m


def _vmem_limit(computed_bytes):
    # Explicit scoped-VMEM limit: computed footprint + headroom, floored at the
    # smallest per-chip default (16 MiB) and capped at v7x's 64 MiB physical VMEM.
    return int(min(max(computed_bytes + 4 * 2**20, 16 * 2**20), 64 * 2**20))


# ---------------------------------------------------------------------------
# Pass 1: per-token absmax fake-quantization of the activations (hoisted).
# ---------------------------------------------------------------------------
def _quant_act_kernel(x_ref, q_ref, s_ref):
    q_max = 127.0  # a_bits = 8 -> 2**(8-1) - 1
    x = x_ref[...]                                                  # (BM, Kp), native dtype
    # absmax directly on the input dtype (max/abs are exact), upcast afterwards.
    absmax = jnp.max(jnp.abs(x), axis=-1, keepdims=True).astype(jnp.float32)
    scales = jnp.maximum(absmax, 1e-5) * (1.0 / q_max)              # (BM, 1) f32
    # reciprocal+multiply instead of division (EUP slot, otherwise idle here).
    # NOTE: not bit-identical to the reference's division -- a value sitting exactly
    # on a .5 rounding boundary could land one quant level away (harmless fake-quant).
    inv = pl.reciprocal(scales, approx=True)
    q = jnp.round(x.astype(jnp.float32) * inv)                      # ints in [-127, 127]
    q_ref[...] = q.astype(q_ref.dtype)                              # bf16 holds them exactly
    s_ref[...] = scales


# ---------------------------------------------------------------------------
# Pass 2: (M, N, K)-tiled matmul, f32 accumulator, scale/bias folded at k==last.
# ---------------------------------------------------------------------------
def _quant_matmul_kernel(q_ref, w_ref, s_ref, b_ref, o_ref, acc_ref):
    k = pl.program_id(2)

    @pl.when(k == 0)
    def _():
        acc_ref[...] = jnp.zeros_like(acc_ref)

    acc_ref[...] += jnp.dot(q_ref[...], w_ref[...],
                            preferred_element_type=jnp.float32)

    @pl.when(k == pl.num_programs(2) - 1)
    def _():
        y = acc_ref[...] * s_ref[...] + b_ref[...].astype(jnp.float32)
        o_ref[...] = y.astype(o_ref.dtype)


def prepare_weight(weight, bias, *, tn=256, tk=512):
    """One-time relayout/padding, hoisted out of the per-call hot path.

    weight (out_features, in_features) -> (K_pad, N_pad); bias -> (1, N_pad).
    N is padded lane-dense (multiple of a 128-aligned N tile); K is padded only
    when it must be split into 128-multiple K tiles.
    """
    assert tn % 128 == 0 and tk % 128 == 0
    n, k = weight.shape
    block_n = min(tn, _round_up(n, 128))
    n_pad = _round_up(n, block_n)
    if k <= tk:
        block_k, k_pad = k, k
    else:
        block_k, k_pad = tk, _round_up(k, tk)
    w_t = jnp.zeros((k_pad, n_pad), dtype=weight.dtype).at[:k, :n].set(weight.T)
    if bias is None:
        bias_p = jnp.zeros((1, n_pad), dtype=weight.dtype)
    else:
        bias_p = jnp.zeros((1, n_pad), dtype=bias.dtype).at[:, :n].set(bias.reshape(1, -1))
    return w_t, bias_p, n, block_n, block_k


def quant_linear(x, w_t, bias_p, *, out_features, block_n, block_k, tm=512):
    """x: (..., in_features); w_t: (K_pad, N_pad) from prepare_weight; bias_p: (1, N_pad).
    Returns (..., out_features) in x.dtype."""
    k_pad, n_pad = w_t.shape
    x_shape = x.shape
    k = x_shape[-1]
    x2d = x.reshape(-1, k)
    m = x2d.shape[0]

    # bf16 packs 16 rows per sublane group -> M blocks in multiples of 16.
    block_m = min(tm, _round_up(m, 16))
    m_pad = _round_up(m, block_m)
    pad_m, pad_k = m_pad - m, k_pad - k
    if pad_m or pad_k:
        x2d = jnp.pad(x2d, ((0, pad_m), (0, pad_k)))

    # ---------------- Pass 1: per-token quantization ----------------
    # The prologue needs the full K row resident; shrink its M block if K is wide.
    bm_q = block_m
    while bm_q > 16 and bm_q % 16 == 0 and bm_q * k_pad * 4 > 4 * 2**20:
        bm_q //= 2
    quant_vmem = (2 * bm_q * k_pad * 2          # x tiles (double-buffered)
                  + 2 * bm_q * k_pad * 2        # q output tiles
                  + 3 * bm_q * k_pad * 4        # f32 temporaries
                  + 4 * bm_q * 4)               # scales tiles
    q_x, scales = pl.pallas_call(
        _quant_act_kernel,
        out_shape=(jax.ShapeDtypeStruct((m_pad, k_pad), jnp.bfloat16),
                   jax.ShapeDtypeStruct((m_pad, 1), jnp.float32)),
        grid=(m_pad // bm_q,),
        in_specs=[pl.BlockSpec((bm_q, k_pad), lambda i: (i, 0))],
        out_specs=(pl.BlockSpec((bm_q, k_pad), lambda i: (i, 0)),
                   pl.BlockSpec((bm_q, 1), lambda i: (i, 0))),
        compiler_params=pltpu.CompilerParams(
            dimension_semantics=("parallel",),
            vmem_limit_bytes=_vmem_limit(quant_vmem)),
    )(x2d)

    # ---------------- Pass 2: K-tiled matmul ----------------
    grid = (m_pad // block_m, n_pad // block_n, k_pad // block_k)
    out_bytes = jnp.dtype(x.dtype).itemsize
    mm_vmem = (2 * block_m * block_k * 2               # q tiles (bf16, x2 buffers)
               + 2 * block_k * block_n * 2             # w tiles
               + 2 * block_m * block_n * out_bytes     # output tiles
               + 2 * (block_m * 4 + block_n * 2)       # scales + bias tiles
               + 3 * block_m * block_n * 4)            # accumulator + epilogue temps

    out = pl.pallas_call(
        _quant_matmul_kernel,
        out_shape=jax.ShapeDtypeStruct((m_pad, n_pad), x.dtype),
        grid=grid,
        in_specs=[
            pl.BlockSpec((block_m, block_k), lambda i, j, kk: (i, kk)),   # q levels
            pl.BlockSpec((block_k, block_n), lambda i, j, kk: (kk, j)),   # weight
            pl.BlockSpec((block_m, 1), lambda i, j, kk: (i, 0)),          # per-row scales
            pl.BlockSpec((1, block_n), lambda i, j, kk: (0, j)),          # bias
        ],
        out_specs=pl.BlockSpec((block_m, block_n), lambda i, j, kk: (i, j)),
        scratch_shapes=[pltpu.VMEM((block_m, block_n), jnp.float32)],
        compiler_params=pltpu.CompilerParams(
            dimension_semantics=("parallel", "parallel", "arbitrary"),
            vmem_limit_bytes=_vmem_limit(mm_vmem)),
    )(q_x, w_t, scales, bias_p)

    out = out[:m, :out_features]
    return out.reshape(*x_shape[:-1], out_features)


def quant_linear_ref(x, weight, bias):
    """Pure-JAX reference mirroring the PyTorch forward (per_token act quant)."""
    q_max = 127.0
    xf = x.astype(jnp.float32)
    scales = jnp.max(jnp.abs(xf), axis=-1, keepdims=True)
    scales = jnp.maximum(scales, 1e-5) / q_max
    q_x = jnp.round(xf / scales) * scales
    y = q_x @ weight.astype(jnp.float32).T
    if bias is not None:
        y = y + bias.astype(jnp.float32)
    return y.astype(x.dtype)


if __name__ == "__main__":
    # Shapes implied by the module: batch=2, seq=8, in_features=32, out_features=64.
    batch, seq, in_features, out_features = 2, 8, 32, 64

    key = jax.random.PRNGKey(0)
    kx, kw = jax.random.split(key)

    x = jax.random.normal(kx, (batch, seq, in_features), dtype=jnp.float32).astype(jnp.bfloat16)
    # register_buffer('weight', torch.randn(out_features, in_features, dtype=fp16))
    weight = jax.random.normal(kw, (out_features, in_features), dtype=jnp.float32).astype(jnp.bfloat16)
    # register_buffer('bias', torch.zeros((1, out_features), dtype=fp16))
    bias = jnp.zeros((1, out_features), dtype=jnp.bfloat16)

    # One-time weight relayout/padding (hoisted out of the per-call path).
    w_t, bias_p, n, block_n, block_k = prepare_weight(weight, bias)

    y = quant_linear(x, w_t, bias_p, out_features=n, block_n=block_n, block_k=block_k)
    y = jax.block_until_ready(y)

    y_ref = quant_linear_ref(x, weight, bias)
    assert y.shape == (batch, seq, out_features)
    assert jnp.allclose(y.astype(jnp.float32), y_ref.astype(jnp.float32), atol=1e-1, rtol=1e-2)

    print("KERNEL_OK")
</pallas_src>

<mosaic_0001>
module attributes {stable_mosaic.version = 11 : i64} {
  func.func @_quant_act_kernel(%arg0: i32, %arg1: memref<16x32xbf16, #tpu.memory_space<vmem>>, %arg2: memref<16x32xbf16, #tpu.memory_space<vmem>>, %arg3: memref<16x1xf32, #tpu.memory_space<vmem>>) attributes {dimension_semantics = [#tpu.dimension_semantics<parallel>], iteration_bounds = array<i64: 1>, scalar_prefetch = 0 : i64, scratch_operands = 0 : i64, tpu.core_type = #tpu.core_type<tc>, window_params = [{transform_indices = @transform_0, window_bounds = array<i64: 16, 32>}, {transform_indices = @transform_1, window_bounds = array<i64: 16, 32>}, {transform_indices = @transform_2, window_bounds = array<i64: 16, 1>}]} {
    %c0 = arith.constant 0 : index
    %c0_0 = arith.constant 0 : index
    %0 = vector.load %arg1[%c0, %c0_0] : memref<16x32xbf16, #tpu.memory_space<vmem>>, vector<16x32xbf16>
    %1 = math.absf %0 : vector<16x32xbf16>
    %cst = arith.constant dense<0xFF80> : vector<16xbf16>
    %2 = vector.multi_reduction <maximumf>, %1, %cst [1] : vector<16x32xbf16> to vector<16xbf16>
    %3 = vector.shape_cast %2 : vector<16xbf16> to vector<16x1xbf16>
    %4 = arith.extf %3 : vector<16x1xbf16> to vector<16x1xf32>
    %cst_1 = arith.constant 9.99999974E-6 : f32
    %5 = vector.broadcast %cst_1 : f32 to vector<16x1xf32>
    %6 = arith.maximumf %4, %5 : vector<16x1xf32>
    %cst_2 = arith.constant 0.00787401571 : f32
    %7 = vector.broadcast %cst_2 : f32 to vector<16x1xf32>
    %8 = arith.mulf %6, %7 : vector<16x1xf32>
    %9 = tpu.reciprocal %8 {approx = true} : vector<16x1xf32> -> vector<16x1xf32>
    %10 = arith.extf %0 : vector<16x32xbf16> to vector<16x32xf32>
    %11 = vector.broadcast %9 : vector<16x1xf32> to vector<16x32xf32>
    %12 = arith.mulf %10, %11 : vector<16x32xf32>
    %13 = math.roundeven %12 : vector<16x32xf32>
    %14 = arith.truncf %13 : vector<16x32xf32> to vector<16x32xbf16>
    %c0_3 = arith.constant 0 : index
    %c0_4 = arith.constant 0 : index
    %15 = vector.load %arg2[%c0_3, %c0_4] : memref<16x32xbf16, #tpu.memory_space<vmem>>, vector<16x32xbf16>
    tpu.vector_store %arg2[%c0_3, %c0_4], %14 {strides = array<i32>} : memref<16x32xbf16, #tpu.memory_space<vmem>>, vector<16x32xbf16>,
    %c0_5 = arith.constant 0 : index
    %c0_6 = arith.constant 0 : index
    %16 = vector.load %arg3[%c0_5, %c0_6] : memref<16x1xf32, #tpu.memory_space<vmem>>, vector<16x1xf32>
    tpu.vector_store %arg3[%c0_5, %c0_6], %8 {strides = array<i32>} : memref<16x1xf32, #tpu.memory_space<vmem>>, vector<16x1xf32>,
    return
  }
  func.func @transform_0(%arg0: i32) -> (i32, i32) {
    %c0_i32 = arith.constant 0 : i32
    %c0_i32_0 = arith.constant 0 : i32
    return %arg0, %c0_i32 : i32, i32
  }
  func.func @transform_1(%arg0: i32) -> (i32, i32) {
    %c0_i32 = arith.constant 0 : i32
    %c0_i32_0 = arith.constant 0 : i32
    return %arg0, %c0_i32 : i32, i32
  }
  func.func @transform_2(%arg0: i32) -> (i32, i32) {
    %c0_i32 = arith.constant 0 : i32
    %c0_i32_0 = arith.constant 0 : i32
    return %arg0, %c0_i32 : i32, i32
  }
}

</mosaic_0001>

<llo_original>
// kernel: tpu_custom_call.1
$region0: #{tpu_custom_call.1}
  #allocation0 [shape = 'u32[]', space=smem, size = 0x4, offset = 0x4, fixed_abs, tag = 'smem constant byte address 0x4 - core index']
  #allocation1 [shape = 'u32[72,128]{1,0:T(1,128)}', space=vmem, size = 0x9000, scoped, tag = 'internal scratch']
  %s0 = inlined_call_operand.hbm [shape: bf16[16,32], index: 0, kind: input, shape index: {}]
  %s1 = inlined_call_operand.hbm [shape: bf16[16,32], index: 1, kind: output, shape index: {0}]
  %s2 = inlined_call_operand.vmem [shape: f32[16,1], index: 2, kind: output, shape index: {1}]
  %3 = xla_tuple %s1, %s2
  %s4 = sld [smem:[#allocation0]]
  $region26: #{tpu_custom_call.1} parent=0
    _
  %s6 = ssub.s32 1, %s4
  %s7 = scalar_select 0, %s6, %s4
  $region1: #{tpu_custom_call.1} parent=0
    #allocation2 [shape = 'u8[4096]{0}', space=vmem, size = 0x1000, scoped, tag = 'input window, operand 0, single buffered']
    #allocation3 [shape = 's32[1]{0}', space=sflag, size = 0x4, scoped, tag = 'scoped memory for tpu_custom_call.1']
    #allocation4 [shape = 's32[1]{0}', space=sflag, size = 0x4, scoped, tag = 'scoped memory for tpu_custom_call.1']
    #allocation5 [shape = 'u8[4096]{0}', space=vmem, size = 0x1000, scoped, tag = 'output window, operand 0, single buffered']
    %8 = vsyncpa [#allocation3], 0
    %9 = vsyncpa [#allocation4], 0
    // Predicated region
    $region2: #{tpu_custom_call.1} parent=1 // pred_check
      _
    $region3: #{tpu_custom_call.1} parent=1 // pred_check_branch
      %11 = sbr.rel (0) target = $region5
    $region4: #{tpu_custom_call.1} parent=1 // pred_region
      %13 = vsyncadd [#allocation3], 0
      %s14 = sshll.u32 %s0, 4
      %s15 = int_to_ptr.hbm [resolvable:$true] %s14
      %s16 = sshll.u32 [#allocation2], 4
      %s17 = int_to_ptr.vmem [resolvable:$true] %s16
      %22 = dma.hbm_to_vmem [thread:$0]  %s15, 128, %s17, [#allocation3], 64, 64, 4
    $region5: #{tpu_custom_call.1} parent=1 // pred_fallthru
      _
    // Predicated region
    $region6: #{tpu_custom_call.1} parent=1 // pred_check
      _
    $region7: #{tpu_custom_call.1} parent=1 // pred_check_branch
      %24 = sbr.rel (0) target = $region9
    $region8: #{tpu_custom_call.1} parent=1 // pred_region
      %26 = dma.done [#allocation3], 128
    $region9: #{tpu_custom_call.1} parent=1 // pred_fallthru
      _
    %v27 = vld [vmem:[#allocation2] sm:$0xf]
    %v28 = vld [vmem:[#allocation2 + $0x4] sm:$0xf]
    %v29 = vand.u32 2147450879, %v27
    %v30 = vand.u32 2147450879, %v28
    %v31 = vunpack.c.l.bf16 %v29
    %v32 = vunpack.c.l.bf16 %v30
    %vm33 = vcmask 261120
    %v34 = vsel %vm33, %v31, -inf
    %35 = vmax.xlane.f32.xlu0 %v34
    %v36 = vpop.xlane.xlu0 %35
    %v37 = vsel %vm33, %v32, -inf
    %38 = vmax.xlane.f32.xlu0 %v37
    %v39 = vpop.xlane.xlu0 %38
    %v40 = vpack.c.bf16 %v36, %v36
    %v41 = vpack.c.bf16 %v39, %v39
    %v42 = vunpack.c.l.bf16 %v40
    %v43 = vunpack.c.l.bf16 %v41
    %v44 = vmax.f32 %v42, 1e-05
    %v45 = vmax.f32 %v43, 1e-05
    %v46 = vmul.f32 %v44, 0.007874016
    %v47 = vmul.f32 %v45, 0.007874016
    %v48 = vrcp.pop %v46
    %v49 = vrcp.pop %v47
    %v50 = vunpack.c.l.bf16 %v27
    %v51 = vunpack.c.l.bf16 %v28
    %v52 = vmul.f32 %v50, %v48
    %v53 = vmul.f32 %v51, %v49
    %v54 = vround.ne.pseudo %v52
    %v55 = vround.ne.pseudo %v53
    %v56 = vpack.c.bf16 %v54, %v54
    %v57 = vpack.c.bf16 %v55, %v55
    %vm58 = vcmask 257024
    %59 = vst.msk [vmem:[#allocation5] sm:$0xf] %vm58, %v56
    %60 = vst.msk [vmem:[#allocation5 + $0x4] sm:$0xf] %vm58, %v57
    %vm61 = vcmask 7168
    %62 = vst.msk [vmem:[%s2] sm:$0xff] %vm61, %v46
    %63 = vst.msk [vmem:[%s2 + $0x8] sm:$0xff] %vm61, %v47
    // Predicated region
    $region10: #{tpu_custom_call.1} parent=1 // pred_check
      _
    $region11: #{tpu_custom_call.1} parent=1 // pred_check_branch
      %65 = sbr.rel (0) target = $region13
    $region12: #{tpu_custom_call.1} parent=1 // pred_region
      %67 = vsyncadd [#allocation4], 0
      %s68 = sshll.u32 [#allocation5], 4
      %s69 = int_to_ptr.vmem [resolvable:$true] %s68
      %s70 = sshll.u32 %s1, 4
      %s71 = int_to_ptr.hbm [resolvable:$true] %s70
      %76 = dma.vmem_to_hbm [thread:$0]  %s69, 128, %s71, [#allocation4], 64, 64, 4
    $region13: #{tpu_custom_call.1} parent=1 // pred_fallthru
      _
    // Predicated region
    $region14: #{tpu_custom_call.1} parent=1 // pred_check
      _
    $region15: #{tpu_custom_call.1} parent=1 // pred_check_branch
      %78 = sbr.rel (0) target = $region17
    $region16: #{tpu_custom_call.1} parent=1 // pred_region
      _
    $region17: #{tpu_custom_call.1} parent=1 // pred_fallthru
      _
    // Predicated region
    $region18: #{tpu_custom_call.1} parent=1 // pred_check
      _
    $region19: #{tpu_custom_call.1} parent=1 // pred_check_branch
      %80 = sbr.rel (0) target = $region21
    $region20: #{tpu_custom_call.1} parent=1 // pred_region
      %82 = dma.done [#allocation4], 128
    $region21: #{tpu_custom_call.1} parent=1 // pred_fallthru
      _
    // Predicated region
    $region22: #{tpu_custom_call.1} parent=1 // pred_check
      _
    $region23: #{tpu_custom_call.1} parent=1 // pred_check_branch
      %84 = sbr.rel (0) target = $region25
    $region24: #{tpu_custom_call.1} parent=1 // pred_region
      _
    $region25: #{tpu_custom_call.1} parent=1 // pred_fallthru
      _
    %85 = vsyncpa [#allocation3], 1
    %86 = vsyncpa [#allocation4], 1

</llo_original>
